<compile_context>
chip_gen: v6e
topology: v6e:2x2x1
jax: 0.10.0
libtpu: 0.0.40
codegen_flags: <defaults>
</compile_context>

<pallas_src>
import math
from functools import partial

import jax
import jax.numpy as jnp
from jax.experimental import pallas as pl
from jax.experimental.pallas import tpu as pltpu


def _round_up(x, m):
    return ((x + m - 1) // m) * m


def _choose_batch_tile(batch):
    """Rows per grid step: multiple of 16, <=1024, >=2 tiles when possible."""
    b16 = _round_up(max(batch, 1), 16)
    if b16 <= 64:                       # tiny batch: one tile (launch-bound)
        return b16
    if b16 <= 2048:                     # split in two -> both v7x TCs get work
        return _round_up((b16 + 1) // 2, 16)
    n_tiles = -(-b16 // 1024)           # large batch: ~1024-row tiles
    return _round_up(-(-b16 // n_tiles), 16)


def fc_model_kernel(ids_ref, sel_ref, tok_ref, t_ref, b1_ref, w2_ref, b2_ref,
                    o_ref):
    # ids_ref: (TB, U)      int32  streamed token ids (one batch tile)
    # sel_ref: (U, K)       f32    SEL[u, c] = 1 iff column c belongs to pos u
    # tok_ref: (1, K)       f32    COL_TOK[c] = token id of column c (-1 = pad)
    # t_ref  : (K, E_pad)   f32    folded  tanh(emb) @ W1  table (resident)
    # b1_ref : (1, E_pad)   f32
    # w2_ref : (E_pad, MP)  f32
    # b2_ref : (1, MP)      f32
    # o_ref  : (TB, MP)     f32
    ids = ids_ref[...].astype(jnp.float32)                        # (TB, U)
    # Lane-stretch ids to (TB, K) on the MXU: column c gets ids[:, c // (V+1)].
    # TODO(synk): exact for token ids < ~256 under default matmul precision;
    # much larger vocabs would need HIGHEST precision or per-position compares.
    expand = jnp.dot(ids, sel_ref[...], preferred_element_type=jnp.float32)
    multihot = (jnp.abs(expand - tok_ref[...]) < 0.5).astype(jnp.float32)
    h = jnp.dot(multihot, t_ref[...], preferred_element_type=jnp.float32)
    h = jnp.tanh(h + b1_ref[...])                                  # (TB, E_pad)
    y = jnp.dot(h, w2_ref[...], preferred_element_type=jnp.float32)
    o_ref[...] = (y + b2_ref[...]).astype(o_ref.dtype)


def fc_model_prepare(emb_table, w1, b1, w2, b2, utt_len):
    """One-time parameter prep (runs outside the per-call jitted path)."""
    V1, E = emb_table.shape             # vocab_size + 1, embedding_size
    MP = w2.shape[1]
    K = utt_len * V1
    K_pad = _round_up(K, 128)
    E_pad = _round_up(E, 128)

    tanh_tab = jnp.tanh(emb_table.astype(jnp.float32))             # (V1, E)
    w1_r = w1.astype(jnp.float32).reshape(utt_len, E, E)           # (U, E, E)
    t = jnp.einsum("ve,ueh->uvh", tanh_tab, w1_r).reshape(K, E)    # (U*V1, E)
    t_fold = jnp.zeros((K_pad, E_pad), jnp.float32).at[:K, :E].set(t)

    b1_p = jnp.zeros((1, E_pad), jnp.float32).at[0, :E].set(
        b1.astype(jnp.float32))
    w2_p = jnp.zeros((E_pad, MP), jnp.float32).at[:E, :].set(
        w2.astype(jnp.float32))
    b2_r = b2.astype(jnp.float32).reshape(1, MP)

    cols = jnp.arange(K_pad)
    pos = cols // V1
    tok = cols % V1
    valid = cols < K
    sel = jnp.where(valid[None, :]
                    & (pos[None, :] == jnp.arange(utt_len)[:, None]),
                    1.0, 0.0).astype(jnp.float32)                  # (U, K_pad)
    col_tok = jnp.where(valid, tok, -1).astype(jnp.float32)[None, :]  # (1, K)
    return sel, col_tok, t_fold, b1_p, w2_p, b2_r


@partial(jax.jit, static_argnames=("num_meaning_types", "meanings_per_type"))
def fc_model_forward(utts, sel, col_tok, t_fold, b1_p, w2_p, b2_r, *,
                     num_meaning_types, meanings_per_type):
    """utts: (utt_len, batch) int32 token ids -> (batch, M, P) f32 logits."""
    utt_len, batch = utts.shape
    K_pad, E_pad = t_fold.shape
    MP = w2_p.shape[1]

    ids = utts.T.astype(jnp.int32)                                 # (batch, U)
    TB = _choose_batch_tile(batch)
    batch_pad = _round_up(batch, TB)
    if batch_pad != batch:
        ids = jnp.pad(ids, ((0, batch_pad - batch), (0, 0)))
    grid = (batch_pad // TB,)

    # VMEM budget: resident params (double-buffered), streamed tiles, temps.
    mp_lanes = _round_up(MP, 128)
    vmem_bytes = 4 * (
        2 * (_round_up(utt_len, 8) * K_pad       # sel
             + 8 * K_pad                         # col_tok
             + K_pad * E_pad                     # folded table
             + 8 * E_pad                         # b1
             + E_pad * mp_lanes                  # w2
             + 8 * mp_lanes)                     # b2
        + 2 * (TB * 128 + TB * mp_lanes)         # ids + out tiles
        + 4 * TB * max(K_pad, E_pad))            # in-kernel temporaries
    vmem_limit = min(max(vmem_bytes + (2 << 20), 8 << 20), 40 << 20)

    cost = pl.CostEstimate(
        flops=2 * batch_pad * (utt_len * K_pad + K_pad * E_pad + E_pad * MP),
        transcendentals=batch_pad * E_pad,
        bytes_accessed=(batch_pad * utt_len * 4 + batch_pad * MP * 4
                        + 4 * (utt_len * K_pad + K_pad + K_pad * E_pad
                               + E_pad + E_pad * MP + MP)),
    )

    out = pl.pallas_call(
        fc_model_kernel,
        out_shape=jax.ShapeDtypeStruct((batch_pad, MP), jnp.float32),
        grid_spec=pltpu.PrefetchScalarGridSpec(
            num_scalar_prefetch=0,
            grid=grid,
            in_specs=[
                pl.BlockSpec((TB, utt_len), lambda i: (i, 0)),     # ids stream
                pl.BlockSpec((utt_len, K_pad), lambda i: (0, 0)),  # sel
                pl.BlockSpec((1, K_pad), lambda i: (0, 0)),        # col_tok
                pl.BlockSpec((K_pad, E_pad), lambda i: (0, 0)),    # folded T
                pl.BlockSpec((1, E_pad), lambda i: (0, 0)),        # b1
                pl.BlockSpec((E_pad, MP), lambda i: (0, 0)),       # w2
                pl.BlockSpec((1, MP), lambda i: (0, 0)),           # b2
            ],
            out_specs=pl.BlockSpec((TB, MP), lambda i: (i, 0)),
        ),
        compiler_params=pltpu.CompilerParams(
            dimension_semantics=("parallel",),   # batch tiles over v7x TCs
            vmem_limit_bytes=vmem_limit,
        ),
        cost_estimate=cost,
    )(ids, sel, col_tok, t_fold, b1_p, w2_p, b2_r)

    out = out[:batch]
    return out.reshape(batch, num_meaning_types, meanings_per_type)


if __name__ == "__main__":
    # Small, module-consistent config.
    embedding_size = 32
    vocab_size = 10
    utt_len = 8
    num_meaning_types = 4
    meanings_per_type = 8
    batch = 2

    key = jax.random.PRNGKey(0)
    k_emb, k_w1, k_b1, k_w2, k_b2, k_utt = jax.random.split(key, 6)

    # Deterministic parameter init (shapes match the nn.Module layers).
    emb_table = jax.random.normal(k_emb, (vocab_size + 1, embedding_size),
                                  jnp.float32) * 0.1
    in1 = utt_len * embedding_size
    w1 = jax.random.uniform(k_w1, (in1, embedding_size), jnp.float32,
                            -1.0 / math.sqrt(in1), 1.0 / math.sqrt(in1))
    b1 = jax.random.uniform(k_b1, (embedding_size,), jnp.float32,
                            -1.0 / math.sqrt(in1), 1.0 / math.sqrt(in1))
    out_dim = num_meaning_types * meanings_per_type
    w2 = jax.random.uniform(k_w2, (embedding_size, out_dim), jnp.float32,
                            -1.0 / math.sqrt(embedding_size),
                            1.0 / math.sqrt(embedding_size))
    b2 = jax.random.uniform(k_b2, (out_dim,), jnp.float32,
                            -1.0 / math.sqrt(embedding_size),
                            1.0 / math.sqrt(embedding_size))

    # utts: (utt_len, batch) int token ids in [0, vocab_size].
    utts = jax.random.randint(k_utt, (utt_len, batch), 0, vocab_size + 1,
                              dtype=jnp.int32)

    params = fc_model_prepare(emb_table, w1, b1, w2, b2, utt_len)
    out = fc_model_forward(utts, *params,
                           num_meaning_types=num_meaning_types,
                           meanings_per_type=meanings_per_type)
    out = jax.block_until_ready(out)
    assert out.shape == (batch, num_meaning_types, meanings_per_type)

    # Pure-JAX f32 reference with the original module semantics
    # (gather -> tanh -> Linear -> tanh -> Linear; dropout = eval identity).
    x_ref = jnp.tanh(jnp.take(emb_table, utts.T, axis=0)).reshape(batch, -1)
    ref = (jnp.tanh(x_ref @ w1 + b1) @ w2 + b2).reshape(
        batch, num_meaning_types, meanings_per_type)
    assert jnp.allclose(out, ref, atol=2e-2, rtol=2e-2), (
        float(jnp.max(jnp.abs(out - ref))))

    print("KERNEL_OK")
</pallas_src>

<mosaic_0001>
module attributes {stable_mosaic.version = 11 : i64} {
  func.func @fc_model_kernel(%arg0: i32, %arg1: memref<16x8xi32, #tpu.memory_space<vmem>>, %arg2: memref<8x128xf32, #tpu.memory_space<vmem>>, %arg3: memref<1x128xf32, #tpu.memory_space<vmem>>, %arg4: memref<128x128xf32, #tpu.memory_space<vmem>>, %arg5: memref<1x128xf32, #tpu.memory_space<vmem>>, %arg6: memref<128x32xf32, #tpu.memory_space<vmem>>, %arg7: memref<1x32xf32, #tpu.memory_space<vmem>>, %arg8: memref<16x32xf32, #tpu.memory_space<vmem>>) attributes {dimension_semantics = [#tpu.dimension_semantics<parallel>], iteration_bounds = array<i64: 1>, scalar_prefetch = 0 : i64, scratch_operands = 0 : i64, tpu.core_type = #tpu.core_type<tc>, window_params = [{transform_indices = @transform_0, window_bounds = array<i64: 16, 8>}, {pipeline_mode = #tpu.pipeline_mode<synchronous>, transform_indices = @transform_1, window_bounds = array<i64: 8, 128>}, {pipeline_mode = #tpu.pipeline_mode<synchronous>, transform_indices = @transform_2, window_bounds = array<i64: 1, 128>}, {pipeline_mode = #tpu.pipeline_mode<synchronous>, transform_indices = @transform_3, window_bounds = array<i64: 128, 128>}, {pipeline_mode = #tpu.pipeline_mode<synchronous>, transform_indices = @transform_4, window_bounds = array<i64: 1, 128>}, {pipeline_mode = #tpu.pipeline_mode<synchronous>, transform_indices = @transform_5, window_bounds = array<i64: 128, 32>}, {pipeline_mode = #tpu.pipeline_mode<synchronous>, transform_indices = @transform_6, window_bounds = array<i64: 1, 32>}, {transform_indices = @transform_7, window_bounds = array<i64: 16, 32>}]} {
    %c0 = arith.constant 0 : index
    %c0_0 = arith.constant 0 : index
    %0 = vector.load %arg1[%c0, %c0_0] : memref<16x8xi32, #tpu.memory_space<vmem>>, vector<16x8xi32>
    %1 = arith.sitofp %0 : vector<16x8xi32> to vector<16x8xf32>
    %c0_1 = arith.constant 0 : index
    %c0_2 = arith.constant 0 : index
    %2 = vector.load %arg2[%c0_1, %c0_2] : memref<8x128xf32, #tpu.memory_space<vmem>>, vector<8x128xf32>
    %cst = arith.constant dense<0.000000e+00> : vector<16x128xf32>
    %3 = tpu.matmul %1, %2, %cst {dimension_numbers = #tpu.dot_dimension_numbers<[1], [0], [0], [1], [0, 0, 1, 1], [], []>} : vector<16x8xf32>, vector<8x128xf32>, vector<16x128xf32> -> vector<16x128xf32>
    %c0_3 = arith.constant 0 : index
    %c0_4 = arith.constant 0 : index
    %4 = vector.load %arg3[%c0_3, %c0_4] : memref<1x128xf32, #tpu.memory_space<vmem>>, vector<1x128xf32>
    %5 = vector.broadcast %4 : vector<1x128xf32> to vector<16x128xf32>
    %6 = arith.subf %3, %5 : vector<16x128xf32>
    %7 = math.absf %6 : vector<16x128xf32>
    %cst_5 = arith.constant 5.000000e-01 : f32
    %8 = vector.broadcast %cst_5 : f32 to vector<16x128xf32>
    %9 = arith.cmpf olt, %7, %8 : vector<16x128xf32>
    %10 = arith.extui %9 : vector<16x128xi1> to vector<16x128xi32>
    %11 = arith.sitofp %10 : vector<16x128xi32> to vector<16x128xf32>
    %c0_6 = arith.constant 0 : index
    %c0_7 = arith.constant 0 : index
    %12 = vector.load %arg4[%c0_6, %c0_7] : memref<128x128xf32, #tpu.memory_space<vmem>>, vector<128x128xf32>
    %cst_8 = arith.constant dense<0.000000e+00> : vector<16x128xf32>
    %13 = tpu.matmul %11, %12, %cst_8 {dimension_numbers = #tpu.dot_dimension_numbers<[1], [0], [0], [1], [0, 0, 1, 1], [], []>} : vector<16x128xf32>, vector<128x128xf32>, vector<16x128xf32> -> vector<16x128xf32>
    %c0_9 = arith.constant 0 : index
    %c0_10 = arith.constant 0 : index
    %14 = vector.load %arg5[%c0_9, %c0_10] : memref<1x128xf32, #tpu.memory_space<vmem>>, vector<1x128xf32>
    %15 = vector.broadcast %14 : vector<1x128xf32> to vector<16x128xf32>
    %16 = arith.addf %13, %15 : vector<16x128xf32>
    %17 = math.tanh %16 : vector<16x128xf32>
    %c0_11 = arith.constant 0 : index
    %c0_12 = arith.constant 0 : index
    %18 = vector.load %arg6[%c0_11, %c0_12] : memref<128x32xf32, #tpu.memory_space<vmem>>, vector<128x32xf32>
    %cst_13 = arith.constant dense<0.000000e+00> : vector<16x32xf32>
    %19 = tpu.matmul %17, %18, %cst_13 {dimension_numbers = #tpu.dot_dimension_numbers<[1], [0], [0], [1], [0, 0, 1, 1], [], []>} : vector<16x128xf32>, vector<128x32xf32>, vector<16x32xf32> -> vector<16x32xf32>
    %c0_14 = arith.constant 0 : index
    %c0_15 = arith.constant 0 : index
    %20 = vector.load %arg7[%c0_14, %c0_15] : memref<1x32xf32, #tpu.memory_space<vmem>>, vector<1x32xf32>
    %21 = vector.broadcast %20 : vector<1x32xf32> to vector<16x32xf32>
    %22 = arith.addf %19, %21 : vector<16x32xf32>
    %c0_16 = arith.constant 0 : index
    %c0_17 = arith.constant 0 : index
    %23 = vector.load %arg8[%c0_16, %c0_17] : memref<16x32xf32, #tpu.memory_space<vmem>>, vector<16x32xf32>
    tpu.vector_store %arg8[%c0_16, %c0_17], %22 {strides = array<i32>} : memref<16x32xf32, #tpu.memory_space<vmem>>, vector<16x32xf32>,
    return
  }
  func.func @transform_0(%arg0: i32) -> (i32, i32) {
    %c0_i32 = arith.constant 0 : i32
    %c0_i32_0 = arith.constant 0 : i32
    return %arg0, %c0_i32 : i32, i32
  }
  func.func @transform_1(%arg0: i32) -> (i32, i32) {
    %c0_i32 = arith.constant 0 : i32
    %c0_i32_0 = arith.constant 0 : i32
    %c0_i32_1 = arith.constant 0 : i32
    return %c0_i32, %c0_i32_0 : i32, i32
  }
  func.func @transform_2(%arg0: i32) -> (i32, i32) {
    %c0_i32 = arith.constant 0 : i32
    %c0_i32_0 = arith.constant 0 : i32
    %c0_i32_1 = arith.constant 0 : i32
    return %c0_i32, %c0_i32_0 : i32, i32
  }
  func.func @transform_3(%arg0: i32) -> (i32, i32) {
    %c0_i32 = arith.constant 0 : i32
    %c0_i32_0 = arith.constant 0 : i32
    %c0_i32_1 = arith.constant 0 : i32
    return %c0_i32, %c0_i32_0 : i32, i32
  }
  func.func @transform_4(%arg0: i32) -> (i32, i32) {
    %c0_i32 = arith.constant 0 : i32
    %c0_i32_0 = arith.constant 0 : i32
    %c0_i32_1 = arith.constant 0 : i32
    return %c0_i32, %c0_i32_0 : i32, i32
  }
  func.func @transform_5(%arg0: i32) -> (i32, i32) {
    %c0_i32 = arith.constant 0 : i32
    %c0_i32_0 = arith.constant 0 : i32
    %c0_i32_1 = arith.constant 0 : i32
    return %c0_i32, %c0_i32_0 : i32, i32
  }
  func.func @transform_6(%arg0: i32) -> (i32, i32) {
    %c0_i32 = arith.constant 0 : i32
    %c0_i32_0 = arith.constant 0 : i32
    %c0_i32_1 = arith.constant 0 : i32
    return %c0_i32, %c0_i32_0 : i32, i32
  }
  func.func @transform_7(%arg0: i32) -> (i32, i32) {
    %c0_i32 = arith.constant 0 : i32
    %c0_i32_0 = arith.constant 0 : i32
    return %arg0, %c0_i32 : i32, i32
  }
}

</mosaic_0001>

<llo_original>
// kernel: fc_model_forward.1
$region0: #{fc_model_forward.1}
  #allocation0 [shape = 'u32[]', space=smem, size = 0x4, offset = 0x4, fixed_abs, tag = 'smem constant byte address 0x4 - core index']
  #allocation1 [shape = 'u32[144,128]{1,0:T(1,128)}', space=vmem, size = 0x12000, scoped, tag = 'internal scratch']
  %s0 = inlined_call_operand.vmem [shape: s32[16,8], index: 0, kind: input, shape index: {}]
  %s1 = inlined_call_operand.vmem [shape: f32[8,128], index: 1, kind: input, shape index: {}]
  %s2 = inlined_call_operand.vmem [shape: f32[1,128], index: 2, kind: input, shape index: {}]
  %s3 = inlined_call_operand.vmem [shape: f32[128,128], index: 3, kind: input, shape index: {}]
  %s4 = inlined_call_operand.vmem [shape: f32[1,128], index: 4, kind: input, shape index: {}]
  %s5 = inlined_call_operand.vmem [shape: f32[128,32], index: 5, kind: input, shape index: {}]
  %s6 = inlined_call_operand.vmem [shape: f32[1,32], index: 6, kind: input, shape index: {}]
  %s7 = inlined_call_operand.vmem [shape: f32[16,32], index: 7, kind: output, shape index: {}]
  %s8 = sld [smem:[#allocation0]]
  $region38: #{fc_model_forward.1} parent=0
    _
  %s10 = ssub.s32 1, %s8
  %s11 = scalar_select 0, %s10, %s8
  // Predicated region
  $region2: #{fc_model_forward.1} parent=0 // pred_check
    _
  $region3: #{fc_model_forward.1} parent=0 // pred_check_branch
    %13 = sbr.rel (0) target = $region5
  $region4: #{fc_model_forward.1} parent=0 // pred_region
    _
  $region5: #{fc_model_forward.1} parent=0 // pred_fallthru
    _
  // Predicated region
  $region6: #{fc_model_forward.1} parent=0 // pred_check
    _
  $region7: #{fc_model_forward.1} parent=0 // pred_check_branch
    %15 = sbr.rel (0) target = $region9
  $region8: #{fc_model_forward.1} parent=0 // pred_region
    _
  $region9: #{fc_model_forward.1} parent=0 // pred_fallthru
    _
  // Predicated region
  $region10: #{fc_model_forward.1} parent=0 // pred_check
    _
  $region11: #{fc_model_forward.1} parent=0 // pred_check_branch
    %17 = sbr.rel (0) target = $region13
  $region12: #{fc_model_forward.1} parent=0 // pred_region
    _
  $region13: #{fc_model_forward.1} parent=0 // pred_fallthru
    _
  // Predicated region
  $region14: #{fc_model_forward.1} parent=0 // pred_check
    _
  $region15: #{fc_model_forward.1} parent=0 // pred_check_branch
    %19 = sbr.rel (0) target = $region17
  $region16: #{fc_model_forward.1} parent=0 // pred_region
    _
  $region17: #{fc_model_forward.1} parent=0 // pred_fallthru
    _
  // Predicated region
  $region18: #{fc_model_forward.1} parent=0 // pred_check
    _
  $region19: #{fc_model_forward.1} parent=0 // pred_check_branch
    %21 = sbr.rel (0) target = $region21
  $region20: #{fc_model_forward.1} parent=0 // pred_region
    _
  $region21: #{fc_model_forward.1} parent=0 // pred_fallthru
    _
  // Predicated region
  $region22: #{fc_model_forward.1} parent=0 // pred_check
    _
  $region23: #{fc_model_forward.1} parent=0 // pred_check_branch
    %23 = sbr.rel (0) target = $region25
  $region24: #{fc_model_forward.1} parent=0 // pred_region
    _
  $region25: #{fc_model_forward.1} parent=0 // pred_fallthru
    _
  // Predicated region
  $region26: #{fc_model_forward.1} parent=0 // pred_check
    _
  $region27: #{fc_model_forward.1} parent=0 // pred_check_branch
    %25 = sbr.rel (0) target = $region29
  $region28: #{fc_model_forward.1} parent=0 // pred_region
    _
  $region29: #{fc_model_forward.1} parent=0 // pred_fallthru
    _
  %v26 = vld [vmem:[%s0] sm:$0xff]
  %v27 = vld [vmem:[%s0 + $0x8] sm:$0xff]
  %v28 = vcvt.s32.f32 %v26
  %v29 = vcvt.s32.f32 %v27
  %v30 = vld [vmem:[%s1] sm:$0xff]
  %vm31 = vcmask 64512
  %v33 = vsel %vm31, %v28, 0
  %v36 = vsel %vm31, %v29, 0
  %38 = vmatprep.subr.mxu0 0.0
  %39 = vmatpush1.msra.mxu0 0.0
  %40 = vmatprep.subr.mxu0 0.0
  %41 = vmatpush1.msra.mxu0 0.0
  %42 = vmatprep.subr.mxu0 0.0
  %43 = vmatpush1.msra.mxu0 0.0
  %44 = vmatprep.subr.mxu0 0.0
  %45 = vmatpush1.msra.mxu0 0.0
  %46 = vmatprep.subr.mxu0 0.0
  %47 = vmatpush1.msra.mxu0 0.0
  %48 = vmatprep.subr.mxu0 0.0
  %49 = vmatpush1.msra.mxu0 0.0
  %50 = vmatprep.subr.mxu0 0.0
  %51 = vmatpush1.msra.mxu0 0.0
  %52 = vmatprep.subr.mxu0 0.0
  %53 = vmatpush1.msra.mxu0 0.0
  %54 = vmatprep.subr.mxu0 0.0
  %55 = vmatpush1.msra.mxu0 0.0
  %56 = vmatprep.subr.mxu0 0.0
  %57 = vmatpush1.msra.mxu0 0.0
  %58 = vmatprep.subr.mxu0 0.0
  %59 = vmatpush1.msra.mxu0 0.0
  %60 = vmatprep.subr.mxu0 0.0
  %61 = vmatpush1.msra.mxu0 0.0
  %62 = vmatprep.subr.mxu0 0.0
  %63 = vmatpush1.msra.mxu0 0.0
  %64 = vmatprep.subr.mxu0 0.0
  %65 = vmatpush1.msra.mxu0 0.0
  %66 = vmatprep.subr.mxu0 0.0
  %67 = vmatpush1.msra.mxu0 0.0
  %68 = vmatprep.subr.mxu0 0.0
  %69 = vmatpush1.msra.mxu0 %v30
  %70 = vmatprep.subr.mxu0 0.0
  %71 = vmatpush2.msra.mxu0 0.0
  %72 = vmatprep.subr.mxu0 0.0
  %73 = vmatpush2.msra.mxu0 0.0
  %74 = vmatprep.subr.mxu0 0.0
  %75 = vmatpush2.msra.mxu0 0.0
  %76 = vmatprep.subr.mxu0 0.0
  %77 = vmatpush2.msra.mxu0 0.0
  %78 = vmatprep.subr.mxu0 0.0
  %79 = vmatpush2.msra.mxu0 0.0
  %80 = vmatprep.subr.mxu0 0.0
  %81 = vmatpush2.msra.mxu0 0.0
  %82 = vmatprep.subr.mxu0 0.0
  %83 = vmatpush2.msra.mxu0 0.0
  %84 = vmatprep.subr.mxu0 0.0
  %85 = vmatpush2.msra.mxu0 0.0
  %86 = vmatprep.subr.mxu0 0.0
  %87 = vmatpush2.msra.mxu0 0.0
  %88 = vmatprep.subr.mxu0 0.0
  %89 = vmatpush2.msra.mxu0 0.0
  %90 = vmatprep.subr.mxu0 0.0
  %91 = vmatpush2.msra.mxu0 0.0
  %92 = vmatprep.subr.mxu0 0.0
  %93 = vmatpush2.msra.mxu0 0.0
  %94 = vmatprep.subr.mxu0 0.0
  %95 = vmatpush2.msra.mxu0 0.0
  %96 = vmatprep.subr.mxu0 0.0
  %97 = vmatpush2.msra.mxu0 0.0
  %98 = vmatprep.subr.mxu0 0.0
  %99 = vmatpush2.msra.mxu0 0.0
  %100 = vmatprep.subr.mxu0 0.0
  %101 = vmatpush2.msra.mxu0 0.0
  %102 = vmatprep.mubr.f32.mxu0 0.0
  %103 = vmatmul.mubr.f32.gmra.mxu0 %v33
  %v104 = vpop.f32.mrf.mxu0
  %v105 = vadd.f32 0.0, %v104
  %v106 = vpop.f32.mrf.mxu0
  %107 = vmatprep.mubr.f32.mxu0 0.0
  %108 = vmatmul.mubr.f32.gmra.mxu0 %v36
  %v109 = vpop.f32.mrf.mxu0
  %v110 = vadd.f32 0.0, %v109
  %v111 = vpop.f32.mrf.mxu0
  %112 = vdwg.mxu0
  %v113 = vld [vmem:[%s2] sm:$0x1]
  %v115 = vlaneseq
  %v116 = vshrl.u32 %v115, 7
  %v117 = vsub.s32 0, %v116
  %v118 = vrot.slane %v113, %v117
  %v120 = vsub.f32 %v105, %v118
  %v121 = vsub.f32 %v110, %v118
  %v122 = vand.u32 2147483647, %v120
  %v123 = vand.u32 2147483647, %v121
  %vm124 = vcmp.lt.f32.partialorder %v122, 0.5
  %vm125 = vcmp.lt.f32.partialorder %v123, 0.5
  %v126 = vsel %vm124, 1, 0
  %v127 = vsel %vm125, 1, 0
  %v128 = vcvt.s32.f32 %v126
  %v129 = vcvt.s32.f32 %v127
  %v130 = vld [vmem:[%s3] sm:$0xff]
  %v131 = vld [vmem:[%s3 + $0x8] sm:$0xff]
  %v132 = vld [vmem:[%s3 + $0x10] sm:$0xff]
  %v133 = vld [vmem:[%s3 + $0x18] sm:$0xff]
  %v134 = vld [vmem:[%s3 + $0x20] sm:$0xff]
  %v135 = vld [vmem:[%s3 + $0x28] sm:$0xff]
  %v136 = vld [vmem:[%s3 + $0x30] sm:$0xff]
  %v137 = vld [vmem:[%s3 + $0x38] sm:$0xff]
  %v138 = vld [vmem:[%s3 + $0x40] sm:$0xff]
  %v139 = vld [vmem:[%s3 + $0x48] sm:$0xff]
  %v140 = vld [vmem:[%s3 + $0x50] sm:$0xff]
  %v141 = vld [vmem:[%s3 + $0x58] sm:$0xff]
  %v142 = vld [vmem:[%s3 + $0x60] sm:$0xff]
  %v143 = vld [vmem:[%s3 + $0x68] sm:$0xff]
  %v144 = vld [vmem:[%s3 + $0x70] sm:$0xff]
  %v145 = vld [vmem:[%s3 + $0x78] sm:$0xff]
  %v146 = vld [vmem:[%s4] sm:$0x1]
  %v148 = vlaneseq
  %v149 = vshrl.u32 %v148, 7
  %v150 = vsub.s32 0, %v149
  %v151 = vrot.slane %v146, %v150
  %153 = vmatprep.subr.mxu0 0.0
  %154 = vmatpush1.msra.mxu0 %v145
  %155 = vmatprep.subr.mxu0 0.0
  %156 = vmatpush1.msra.mxu0 %v144
  %157 = vmatprep.subr.mxu0 0.0
  %158 = vmatpush1.msra.mxu0 %v143
  %159 = vmatprep.subr.mxu0 0.0
  %160 = vmatpush1.msra.mxu0 %v142
  %161 = vmatprep.subr.mxu0 0.0
  %162 = vmatpush1.msra.mxu0 %v141
  %163 = vmatprep.subr.mxu0 0.0
  %164 = vmatpush1.msra.mxu0 %v140
  %165 = vmatprep.subr.mxu0 0.0
  %166 = vmatpush1.msra.mxu0 %v139
  %167 = vmatprep.subr.mxu0 0.0
  %168 = vmatpush1.msra.mxu0 %v138
  %169 = vmatprep.subr.mxu0 0.0
  %170 = vmatpush1.msra.mxu0 %v137
  %171 = vmatprep.subr.mxu0 0.0
  %172 = vmatpush1.msra.mxu0 %v136
  %173 = vmatprep.subr.mxu0 0.0
  %174 = vmatpush1.msra.mxu0 %v135
  %175 = vmatprep.subr.mxu0 0.0
  %176 = vmatpush1.msra.mxu0 %v134
  %177 = vmatprep.subr.mxu0 0.0
  %178 = vmatpush1.msra.mxu0 %v133
  %179 = vmatprep.subr.mxu0 0.0
  %180 = vmatpush1.msra.mxu0 %v132
  %181 = vmatprep.subr.mxu0 0.0
  %182 = vmatpush1.msra.mxu0 %v131
  %183 = vmatprep.subr.mxu0 0.0
  %184 = vmatpush1.msra.mxu0 %v130
  %185 = vmatprep.subr.mxu0 0.0
  %186 = vmatpush2.msra.mxu0 0.0
  %187 = vmatprep.subr.mxu0 0.0
  %188 = vmatpush2.msra.mxu0 0.0
  %189 = vmatprep.subr.mxu0 0.0
  %190 = vmatpush2.msra.mxu0 0.0
  %191 = vmatprep.subr.mxu0 0.0
  %192 = vmatpush2.msra.mxu0 0.0
  %193 = vmatprep.subr.mxu0 0.0
  %194 = vmatpush2.msra.mxu0 0.0
  %195 = vmatprep.subr.mxu0 0.0
  %196 = vmatpush2.msra.mxu0 0.0
  %197 = vmatprep.subr.mxu0 0.0
  %198 = vmatpush2.msra.mxu0 0.0
  %199 = vmatprep.subr.mxu0 0.0
  %200 = vmatpush2.msra.mxu0 0.0
  %201 = vmatprep.subr.mxu0 0.0
  %202 = vmatpush2.msra.mxu0 0.0
  %203 = vmatprep.subr.mxu0 0.0
  %204 = vmatpush2.msra.mxu0 0.0
  %205 = vmatprep.subr.mxu0 0.0
  %206 = vmatpush2.msra.mxu0 0.0
  %207 = vmatprep.subr.mxu0 0.0
  %208 = vmatpush2.msra.mxu0 0.0
  %209 = vmatprep.subr.mxu0 0.0
  %210 = vmatpush2.msra.mxu0 0.0
  %211 = vmatprep.subr.mxu0 0.0
  %212 = vmatpush2.msra.mxu0 0.0
  %213 = vmatprep.subr.mxu0 0.0
  %214 = vmatpush2.msra.mxu0 0.0
  %215 = vmatprep.subr.mxu0 0.0
  %216 = vmatpush2.msra.mxu0 0.0
  %217 = vmatprep.mubr.f32.mxu0 0.0
  %218 = vmatmul.mubr.f32.gmra.mxu0 %v128
  %v219 = vpop.f32.mrf.mxu0
  %v220 = vadd.f32 %v151, %v219
  %v221 = vpop.f32.mrf.mxu0
  %222 = vmatprep.mubr.f32.mxu0 0.0
  %223 = vmatmul.mubr.f32.gmra.mxu0 %v129
  %v224 = vpop.f32.mrf.mxu0
  %v225 = vadd.f32 %v151, %v224
  %v226 = vpop.f32.mrf.mxu0
  %227 = vdwg.mxu0
  %v228 = vtanh.pop %v220
  %v229 = vtanh.pop %v225
  %v230 = vld [vmem:[%s5] sm:$0xff]
  %v231 = vld [vmem:[%s5 + $0x8] sm:$0xff]
  %v232 = vld [vmem:[%s5 + $0x10] sm:$0xff]
  %v233 = vld [vmem:[%s5 + $0x18] sm:$0xff]
  %v234 = vld [vmem:[%s5 + $0x20] sm:$0xff]
  %v235 = vld [vmem:[%s5 + $0x28] sm:$0xff]
  %v236 = vld [vmem:[%s5 + $0x30] sm:$0xff]
  %v237 = vld [vmem:[%s5 + $0x38] sm:$0xff]
  %v238 = vld [vmem:[%s5 + $0x40] sm:$0xff]
  %v239 = vld [vmem:[%s5 + $0x48] sm:$0xff]
  %v240 = vld [vmem:[%s5 + $0x50] sm:$0xff]
  %v241 = vld [vmem:[%s5 + $0x58] sm:$0xff]
  %v242 = vld [vmem:[%s5 + $0x60] sm:$0xff]
  %v243 = vld [vmem:[%s5 + $0x68] sm:$0xff]
  %v244 = vld [vmem:[%s5 + $0x70] sm:$0xff]
  %v245 = vld [vmem:[%s5 + $0x78] sm:$0xff]
  %v246 = vld [vmem:[%s6] sm:$0x1]
  %v248 = vlaneseq
  %v249 = vshrl.u32 %v248, 7
  %v250 = vsub.s32 0, %v249
  %v251 = vrot.slane %v246, %v250
  %253 = vmatprep.subr.mxu0 0.0
  %254 = vmatpush1.msra.mxu0 %v245
  %255 = vmatprep.subr.mxu0 0.0
  %256 = vmatpush1.msra.mxu0 %v244
  %257 = vmatprep.subr.mxu0 0.0
  %258 = vmatpush1.msra.mxu0 %v243
  %259 = vmatprep.subr.mxu0 0.0
  %260 = vmatpush1.msra.mxu0 %v242
  %261 = vmatprep.subr.mxu0 0.0
  %262 = vmatpush1.msra.mxu0 %v241
  %263 = vmatprep.subr.mxu0 0.0
  %264 = vmatpush1.msra.mxu0 %v240
  %265 = vmatprep.subr.mxu0 0.0
  %266 = vmatpush1.msra.mxu0 %v239
  %267 = vmatprep.subr.mxu0 0.0
  %268 = vmatpush1.msra.mxu0 %v238
  %269 = vmatprep.subr.mxu0 0.0
  %270 = vmatpush1.msra.mxu0 %v237
  %271 = vmatprep.subr.mxu0 0.0
  %272 = vmatpush1.msra.mxu0 %v236
  %273 = vmatprep.subr.mxu0 0.0
  %274 = vmatpush1.msra.mxu0 %v235
  %275 = vmatprep.subr.mxu0 0.0
  %276 = vmatpush1.msra.mxu0 %v234
  %277 = vmatprep.subr.mxu0 0.0
  %278 = vmatpush1.msra.mxu0 %v233
  %279 = vmatprep.subr.mxu0 0.0
  %280 = vmatpush1.msra.mxu0 %v232
  %281 = vmatprep.subr.mxu0 0.0
  %282 = vmatpush1.msra.mxu0 %v231
  %283 = vmatprep.subr.mxu0 0.0
  %284 = vmatpush1.msra.mxu0 %v230
  %285 = vmatprep.subr.mxu0 0.0
  %286 = vmatpush2.msra.mxu0 0.0
  %287 = vmatprep.subr.mxu0 0.0
  %288 = vmatpush2.msra.mxu0 0.0
  %289 = vmatprep.subr.mxu0 0.0
  %290 = vmatpush2.msra.mxu0 0.0
  %291 = vmatprep.subr.mxu0 0.0
  %292 = vmatpush2.msra.mxu0 0.0
  %293 = vmatprep.subr.mxu0 0.0
  %294 = vmatpush2.msra.mxu0 0.0
  %295 = vmatprep.subr.mxu0 0.0
  %296 = vmatpush2.msra.mxu0 0.0
  %297 = vmatprep.subr.mxu0 0.0
  %298 = vmatpush2.msra.mxu0 0.0
  %299 = vmatprep.subr.mxu0 0.0
  %300 = vmatpush2.msra.mxu0 0.0
  %301 = vmatprep.subr.mxu0 0.0
  %302 = vmatpush2.msra.mxu0 0.0
  %303 = vmatprep.subr.mxu0 0.0
  %304 = vmatpush2.msra.mxu0 0.0
  %305 = vmatprep.subr.mxu0 0.0
  %306 = vmatpush2.msra.mxu0 0.0
  %307 = vmatprep.subr.mxu0 0.0
  %308 = vmatpush2.msra.mxu0 0.0
  %309 = vmatprep.subr.mxu0 0.0
  %310 = vmatpush2.msra.mxu0 0.0
  %311 = vmatprep.subr.mxu0 0.0
  %312 = vmatpush2.msra.mxu0 0.0
  %313 = vmatprep.subr.mxu0 0.0
  %314 = vmatpush2.msra.mxu0 0.0
  %315 = vmatprep.subr.mxu0 0.0
  %316 = vmatpush2.msra.mxu0 0.0
  %317 = vmatprep.mubr.f32.mxu0 0.0
  %318 = vmatmul.mubr.f32.gmra.mxu0 %v228
  %v319 = vpop.f32.mrf.mxu0
  %v320 = vadd.f32 %v251, %v319
  %v321 = vpop.f32.mrf.mxu0
  %322 = vmatprep.mubr.f32.mxu0 0.0
  %323 = vmatmul.mubr.f32.gmra.mxu0 %v229
  %v324 = vpop.f32.mrf.mxu0
  %v325 = vadd.f32 %v251, %v324
  %v326 = vpop.f32.mrf.mxu0
  %327 = vdwg.mxu0
  %vm328 = vcmask 261120
  %329 = vst.msk [vmem:[%s7] sm:$0xff] %vm328, %v320
  %330 = vst.msk [vmem:[%s7 + $0x8] sm:$0xff] %vm328, %v325
  // Predicated region
  $region30: #{fc_model_forward.1} parent=0 // pred_check
    _
  $region31: #{fc_model_forward.1} parent=0 // pred_check_branch
    %332 = sbr.rel (0) target = $region33
  $region32: #{fc_model_forward.1} parent=0 // pred_region
    _
  $region33: #{fc_model_forward.1} parent=0 // pred_fallthru
    _
  // Predicated region
  $region34: #{fc_model_forward.1} parent=0 // pred_check
    _
  $region35: #{fc_model_forward.1} parent=0 // pred_check_branch
    %334 = sbr.rel (0) target = $region37
  $region36: #{fc_model_forward.1} parent=0 // pred_region
    _
  $region37: #{fc_model_forward.1} parent=0 // pred_fallthru
    _

</llo_original>
